<compile_context>
chip_gen: v6e
topology: v6e:2x2x1
jax: 0.10.0
libtpu: 0.0.40
codegen_flags: <defaults>
</compile_context>

<pallas_src>
import jax
import jax.numpy as jnp
from jax.experimental import pallas as pl
from jax.experimental.pallas import tpu as pltpu

NUM_EMBEDDINGS = 7
EMBEDDING_DIM = 5
NUM_CLASSES = 3


def easy_embedding_kernel(idx_ref, slab_ref, loss_ref):
    """Fused embedding-lookup + linear + sum-MSE, pure VPU.

    idx_ref:  [N] int32 in SMEM (token indices)
    slab_ref: [N + num_embeddings, 3] f32 in VMEM (single packed DMA):
                rows [0, N)                -> y_true
                rows [N, N+num_embeddings) -> W_eff = emb_table @ fc_weight.T
    loss_ref: [1, 1] f32 in SMEM (scalar sum-MSE output)
    """
    n = idx_ref.shape[0]
    c = slab_ref.shape[1]
    acc = jnp.zeros((1, c), jnp.float32)
    # Static unroll over the (tiny) batch; each step is one dynamic sublane
    # gather + one VPU sub/mul/add. No MXU, no XLU until the final reduce.
    for i in range(n):
        e = idx_ref[i]
        # TODO(synk): torch.nn.Embedding raises on out-of-range indices; here
        # an OOB index would just read a wrong slab row (inputs assumed valid).
        y_hat = slab_ref[pl.ds(n + e, 1), :]          # [1, 3] row W_eff[idx[i]]
        diff = y_hat - slab_ref[pl.ds(i, 1), :]       # [1, 3] minus y_true[i]
        acc = acc + diff * diff
    loss_ref[0, 0] = jnp.sum(acc)


def easy_embedding_loss(indices, y_true, emb_table, fc_weight):
    """indices: [N] int, y_true: [N,3] f32,
    emb_table: [num_embeddings, emb_dim] f32, fc_weight: [3, emb_dim] f32."""
    n = indices.shape[0]
    # Fold lookup + linear into one effective table: W_eff[e] = emb_table[e] @ W.T
    # (7x5x3 matmul, done once in plain XLA outside the kernel).
    w_eff = jnp.dot(emb_table, fc_weight.T)                # [num_embeddings, 3]
    slab = jnp.concatenate([y_true, w_eff], axis=0)        # [N + num_emb, 3]
    idx = indices.astype(jnp.int32)                        # [N] -> SMEM

    loss = pl.pallas_call(
        easy_embedding_kernel,
        out_shape=jax.ShapeDtypeStruct((1, 1), jnp.float32),
        in_specs=[
            pl.BlockSpec(memory_space=pltpu.MemorySpace.SMEM),   # indices
            pl.BlockSpec(memory_space=pltpu.MemorySpace.VMEM),   # packed slab
        ],
        out_specs=pl.BlockSpec(memory_space=pltpu.MemorySpace.SMEM),
    )(idx, slab)
    return loss[0, 0]


if __name__ == "__main__":
    key = jax.random.PRNGKey(0)
    k_table, k_w = jax.random.split(key)

    # Deterministic parameter init (shapes from the module's __init__).
    emb_table = jax.random.normal(
        k_table, (NUM_EMBEDDINGS, EMBEDDING_DIM), dtype=jnp.float32)
    fc_weight = jax.random.normal(
        k_w, (NUM_CLASSES, EMBEDDING_DIM), dtype=jnp.float32) * 0.1

    # Inputs consistent with the forward: 4 token indices, y_true is [4, 3].
    x = jnp.array([1, 2, 3, 4], dtype=jnp.int32)
    y_true = jnp.array([[1.0, 0.0, 0.0],
                        [0.0, 1.0, 0.0],
                        [0.5, 0.5, 0.5],
                        [0.0, 0.0, 1.0]], dtype=jnp.float32)

    loss = easy_embedding_loss(x, y_true, emb_table, fc_weight)
    loss = jax.block_until_ready(loss)

    # Pure-JAX reference check.
    ref = jnp.sum((emb_table[x] @ fc_weight.T - y_true) ** 2)
    assert jnp.allclose(loss, ref, rtol=1e-5, atol=1e-5), (loss, ref)

    print("KERNEL_OK")
</pallas_src>

<mosaic_0001>
module attributes {stable_mosaic.version = 11 : i64} {
  func.func @easy_embedding_kernel(%arg0: memref<4xi32, #tpu.memory_space<smem>>, %arg1: memref<11x3xf32, #tpu.memory_space<vmem>>, %arg2: memref<1x1xf32, #tpu.memory_space<smem>>) attributes {dimension_semantics = [], scalar_prefetch = 0 : i64, scratch_operands = 0 : i64, tpu.core_type = #tpu.core_type<tc>} {
    %cst = arith.constant 0.000000e+00 : f32
    %0 = vector.broadcast %cst : f32 to vector<1x3xf32>
    %c0 = arith.constant 0 : index
    %1 = memref.load %arg0[%c0] : memref<4xi32, #tpu.memory_space<smem>>
    %c4_i32 = arith.constant 4 : i32
    %2 = arith.addi %c4_i32, %1 : i32
    %3 = arith.index_cast %2 : i32 to index
    %c0_0 = arith.constant 0 : index
    %4 = vector.load %arg1[%3, %c0_0] : memref<11x3xf32, #tpu.memory_space<vmem>>, vector<1x3xf32>
    %c0_1 = arith.constant 0 : index
    %c0_2 = arith.constant 0 : index
    %5 = vector.load %arg1[%c0_1, %c0_2] : memref<11x3xf32, #tpu.memory_space<vmem>>, vector<1x3xf32>
    %6 = arith.subf %4, %5 : vector<1x3xf32>
    %7 = arith.mulf %6, %6 : vector<1x3xf32>
    %8 = arith.addf %0, %7 : vector<1x3xf32>
    %c1 = arith.constant 1 : index
    %9 = memref.load %arg0[%c1] : memref<4xi32, #tpu.memory_space<smem>>
    %c4_i32_3 = arith.constant 4 : i32
    %10 = arith.addi %c4_i32_3, %9 : i32
    %11 = arith.index_cast %10 : i32 to index
    %c0_4 = arith.constant 0 : index
    %12 = vector.load %arg1[%11, %c0_4] : memref<11x3xf32, #tpu.memory_space<vmem>>, vector<1x3xf32>
    %c1_5 = arith.constant 1 : index
    %c0_6 = arith.constant 0 : index
    %13 = vector.load %arg1[%c1_5, %c0_6] : memref<11x3xf32, #tpu.memory_space<vmem>>, vector<1x3xf32>
    %14 = arith.subf %12, %13 : vector<1x3xf32>
    %15 = arith.mulf %14, %14 : vector<1x3xf32>
    %16 = arith.addf %8, %15 : vector<1x3xf32>
    %c2 = arith.constant 2 : index
    %17 = memref.load %arg0[%c2] : memref<4xi32, #tpu.memory_space<smem>>
    %c4_i32_7 = arith.constant 4 : i32
    %18 = arith.addi %c4_i32_7, %17 : i32
    %19 = arith.index_cast %18 : i32 to index
    %c0_8 = arith.constant 0 : index
    %20 = vector.load %arg1[%19, %c0_8] : memref<11x3xf32, #tpu.memory_space<vmem>>, vector<1x3xf32>
    %c2_9 = arith.constant 2 : index
    %c0_10 = arith.constant 0 : index
    %21 = vector.load %arg1[%c2_9, %c0_10] : memref<11x3xf32, #tpu.memory_space<vmem>>, vector<1x3xf32>
    %22 = arith.subf %20, %21 : vector<1x3xf32>
    %23 = arith.mulf %22, %22 : vector<1x3xf32>
    %24 = arith.addf %16, %23 : vector<1x3xf32>
    %c3 = arith.constant 3 : index
    %25 = memref.load %arg0[%c3] : memref<4xi32, #tpu.memory_space<smem>>
    %c4_i32_11 = arith.constant 4 : i32
    %26 = arith.addi %c4_i32_11, %25 : i32
    %27 = arith.index_cast %26 : i32 to index
    %c0_12 = arith.constant 0 : index
    %28 = vector.load %arg1[%27, %c0_12] : memref<11x3xf32, #tpu.memory_space<vmem>>, vector<1x3xf32>
    %c3_13 = arith.constant 3 : index
    %c0_14 = arith.constant 0 : index
    %29 = vector.load %arg1[%c3_13, %c0_14] : memref<11x3xf32, #tpu.memory_space<vmem>>, vector<1x3xf32>
    %30 = arith.subf %28, %29 : vector<1x3xf32>
    %31 = arith.mulf %30, %30 : vector<1x3xf32>
    %32 = arith.addf %24, %31 : vector<1x3xf32>
    %33 = vector.shape_cast %32 : vector<1x3xf32> to vector<1x1x3xf32>
    %cst_15 = arith.constant dense<0.000000e+00> : vector<1xf32>
    %34 = vector.multi_reduction <add>, %33, %cst_15 [1, 2] : vector<1x1x3xf32> to vector<1xf32>
    %35 = vector.shape_cast %34 : vector<1xf32> to vector<1x1x1xf32>
    %36 = vector.extract %35[0, 0, 0] : f32 from vector<1x1x1xf32>
    %c0_16 = arith.constant 0 : index
    %c0_17 = arith.constant 0 : index
    %37 = memref.load %arg2[%c0_16, %c0_17] : memref<1x1xf32, #tpu.memory_space<smem>>
    memref.store %36, %arg2[%c0_16, %c0_17] : memref<1x1xf32, #tpu.memory_space<smem>>
    return
  }
}

</mosaic_0001>

<llo_original>
// kernel: tpu_custom_call.1
$region0: #{tpu_custom_call.1}
  #allocation0 [shape = 'u32[]', space=smem, size = 0x4, offset = 0x4, fixed_abs, tag = 'smem constant byte address 0x4 - core index']
  #allocation1 [shape = 'u32[144,128]{1,0:T(1,128)}', space=vmem, size = 0x12000, scoped, tag = 'internal scratch']
  %s0 = inlined_call_operand.vmem [shape: s32[4], index: 0, kind: input, shape index: {}]
  %s1 = inlined_call_operand.vmem [shape: f32[11,3], index: 1, kind: input, shape index: {}]
  %s2 = inlined_call_operand.hbm [shape: f32[1,1], index: 2, kind: output, shape index: {}]
  %s3 = sld [smem:[#allocation0]]
  $region22: #{tpu_custom_call.1} parent=0
    _
  %s5 = ssub.s32 1, %s3
  %s6 = scalar_select 0, %s5, %s3
  $region1: #{tpu_custom_call.1} parent=0
    #allocation2 [shape = 'u8[512]{0}', space=smem, size = 0x200, scoped, tag = 'input window, operand 0, single buffered']
    #allocation3 [shape = 's32[1]{0}', space=sflag, size = 0x4, scoped, tag = 'scoped memory for tpu_custom_call.1']
    #allocation4 [shape = 's32[1]{0}', space=sflag, size = 0x4, scoped, tag = 'scoped memory for tpu_custom_call.1']
    #allocation5 [shape = 'u8[512]{0}', space=smem, size = 0x200, scoped, tag = 'output window, operand 0, single buffered']
    %7 = vsyncpa [#allocation4], 0
    %8 = vsyncpa [#allocation3], 0
    // Predicated region
    $region2: #{tpu_custom_call.1} parent=1 // pred_check
      _
    $region3: #{tpu_custom_call.1} parent=1 // pred_check_branch
      %10 = sbr.rel (0) target = $region5
    $region4: #{tpu_custom_call.1} parent=1 // pred_region
      %s12 = ssub.s32 16, 16
      %13 = vsyncadd [#allocation4], %s12
      %s15 = sshll.u32 %s0, 4
      %s16 = int_to_ptr.vmem [resolvable:$true] %s15
      %18 = dma.vmem_to_smem %s16, 16, [#allocation2], [#allocation4]
    $region5: #{tpu_custom_call.1} parent=1 // pred_fallthru
      _
    // Predicated region
    $region6: #{tpu_custom_call.1} parent=1 // pred_check
      _
    $region7: #{tpu_custom_call.1} parent=1 // pred_check_branch
      %20 = sbr.rel (0) target = $region9
    $region8: #{tpu_custom_call.1} parent=1 // pred_region
      _
    $region9: #{tpu_custom_call.1} parent=1 // pred_fallthru
      _
    // Predicated region
    $region10: #{tpu_custom_call.1} parent=1 // pred_check
      _
    $region11: #{tpu_custom_call.1} parent=1 // pred_check_branch
      %22 = sbr.rel (0) target = $region13
    $region12: #{tpu_custom_call.1} parent=1 // pred_region
      %23 = dma.done [#allocation4], 16
    $region13: #{tpu_custom_call.1} parent=1 // pred_fallthru
      _
    %24 = sfence
    %s25 = sld [smem:[#allocation2]]
    %s26 = sadd.s32 %s25, 4
    %s27 = scalar_lea.vmem %s1, %s26
    %v28 = vld [vmem:[%s27] sm:$0x1]
    %v29 = vld [vmem:[%s1] sm:$0x1]
    %v30 = vsub.f32 %v28, %v29
    %v31 = vmul.f32 %v30, %v30
    %v32 = vadd.f32 %v31, 0.0
    %s33 = sld [smem:[#allocation2 + $0x1]]
    %s34 = sadd.s32 %s33, 4
    %s35 = scalar_lea.vmem %s1, %s34
    %v36 = vld [vmem:[%s35] sm:$0x1]
    %v37 = vld [vmem:[%s1 + $0x1] sm:$0x1]
    %v38 = vsub.f32 %v36, %v37
    %v39 = vmul.f32 %v38, %v38
    %v40 = vadd.f32 %v32, %v39
    %s41 = sld [smem:[#allocation2 + $0x2]]
    %s42 = sadd.s32 %s41, 4
    %s43 = scalar_lea.vmem %s1, %s42
    %v44 = vld [vmem:[%s43] sm:$0x1]
    %v45 = vld [vmem:[%s1 + $0x2] sm:$0x1]
    %v46 = vsub.f32 %v44, %v45
    %v47 = vmul.f32 %v46, %v46
    %v48 = vadd.f32 %v40, %v47
    %s49 = sld [smem:[#allocation2 + $0x3]]
    %s50 = sadd.s32 %s49, 4
    %s51 = scalar_lea.vmem %s1, %s50
    %v52 = vld [vmem:[%s51] sm:$0x1]
    %v53 = vld [vmem:[%s1 + $0x3] sm:$0x1]
    %v54 = vsub.f32 %v52, %v53
    %v55 = vmul.f32 %v54, %v54
    %v56 = vadd.f32 %v48, %v55
    %vm57 = vcmask 16384
    %v58 = vsel %vm57, %v56, 0.0
    %59 = vadd.xlane.f32.xlu0 %v58
    %v60 = vpop.xlane.xlu0 %59
    %v61 = vrot.slane %v60, 4
    %v62 = vadd.f32 %v60, %v61
    %v63 = vrot.slane %v62, 2
    %v64 = vadd.f32 %v62, %v63
    %v65 = vrot.slane %v64, 1
    %v66 = vadd.f32 %v64, %v65
    %s67 = vtos %v66
    %s68 = scalar_lea.smem [#allocation5], 0
    %69 = sst [smem:[%s68]] %s67
    // Predicated region
    $region14: #{tpu_custom_call.1} parent=1 // pred_check
      _
    $region15: #{tpu_custom_call.1} parent=1 // pred_check_branch
      %71 = sbr.rel (0) target = $region17
    $region16: #{tpu_custom_call.1} parent=1 // pred_region
      %s73 = ssub.s32 16, 16
      %74 = vsyncadd [#allocation3], %s73
      %77 = dma.smem_to_hbm [#allocation5], 16, %s2, [#allocation3]
    $region17: #{tpu_custom_call.1} parent=1 // pred_fallthru
      _
    // Predicated region
    $region18: #{tpu_custom_call.1} parent=1 // pred_check
      _
    $region19: #{tpu_custom_call.1} parent=1 // pred_check_branch
      %79 = sbr.rel (0) target = $region21
    $region20: #{tpu_custom_call.1} parent=1 // pred_region
      %80 = dma.done [#allocation3], 16
    $region21: #{tpu_custom_call.1} parent=1 // pred_fallthru
      _
    %81 = sfence
    %82 = vsyncpa [#allocation3], 1
    %83 = vsyncpa [#allocation4], 1

</llo_original>
